<compile_context>
chip_gen: v5e
topology: v5e:2x2
jax: 0.10.0
libtpu: 0.0.40
codegen_flags: <defaults>
</compile_context>

<pallas_src>
import numpy as np
import jax
import jax.numpy as jnp
from jax.experimental import pallas as pl
from jax.experimental.pallas import tpu as pltpu


def _build_static_slabs(dim_list, target):
    """set_target-time constants: block-diagonal selection matrix + packed target slab."""
    dim_list = tuple(int(d) for d in dim_list)
    d0 = dim_list[0]
    rest_dims = dim_list[1:]
    rest0 = int(np.prod(rest_dims))
    Rp = ((rest0 + 127) // 128) * 128          # pad each re/im column block to 128 lanes
    n_rest = len(rest_dims)
    D1 = 2 * int(sum(rest_dims))

    # row-major strides of each rest mode inside the flattened 'rest' axis
    strides, s = [], 1
    for d in reversed(rest_dims):
        strides.append(s)
        s *= d
    strides = list(reversed(strides))

    # sel_bd[row, col]: maps lane layout of lhs1 = [re_1|im_1|re_2|im_2|...] to the expanded
    # per-mode factors e_k[r, j] = psi_k[r, (j // stride_k) % d_k]; zeros elsewhere (padding).
    sel_bd = np.zeros((D1, n_rest * 2 * Rp), np.float32)
    j = np.arange(rest0)
    off = 0
    for k, d in enumerate(rest_dims):
        idx = (j // strides[k]) % d
        cb = k * 2 * Rp
        sel_bd[off + idx, cb + j] = 1.0               # re block
        sel_bd[off + d + idx, cb + Rp + j] = 1.0      # im block
        off += 2 * d

    # t_pack: lanes [0:Rp]  -> [T_re ; T_im]   (weights for Re<conj(T), F>)
    #         lanes [Rp:2Rp]-> [-T_im ; T_re]  (weights for Im<conj(T), F>)
    t2 = np.asarray(target).astype(np.complex128).reshape(d0, rest0)
    tre = np.real(t2).astype(np.float32)
    tim = np.imag(t2).astype(np.float32)
    t_pack = np.zeros((2 * d0, 2 * Rp), np.float32)
    t_pack[:d0, :rest0] = tre
    t_pack[d0:, :rest0] = tim
    t_pack[:d0, Rp:Rp + rest0] = -tim
    t_pack[d0:, Rp:Rp + rest0] = tre
    return sel_bd, t_pack, Rp, n_rest


def _make_kernel(n_rest, Rp):
    f32 = jnp.float32

    def kernel(lhs1_ref, m0_ref, selbd_ref, tpack_ref, out_ref):
        # ---- MXU push #1: expand every rest mode against the static block-diag selection ----
        e = jnp.dot(lhs1_ref[...], selbd_ref[...],
                    preferred_element_type=f32)            # (rank, n_rest*2*Rp)

        # ---- complex Hadamard chain over rest modes (VPU, 128-aligned output slices) ----
        w_re = e[:, 0:Rp]
        w_im = e[:, Rp:2 * Rp]
        for k in range(1, n_rest):
            b = 2 * Rp * k
            er = e[:, b:b + Rp]
            ei = e[:, b + Rp:b + 2 * Rp]
            w_re, w_im = w_re * er - w_im * ei, w_re * ei + w_im * er

        # ---- MXU push #2: CP tensor F = sum_r c_r psi_0[r] (x) w[r]  ([F_re ; F_im]) ----
        w2 = jnp.concatenate([w_re, w_im], axis=0)          # (2*rank, Rp)
        f = jnp.dot(m0_ref[...], w2, preferred_element_type=f32)   # (2*d0, Rp)

        # ---- tail: one shared sublane reduction + three short lane reductions ----
        tp = tpack_ref[...]
        prods = jnp.concatenate(
            [f * f, tp[:, 0:Rp] * f, tp[:, Rp:2 * Rp] * f], axis=1)  # (2*d0, 3*Rp)
        col = jnp.sum(prods, axis=0, keepdims=True)                  # (1, 3*Rp)
        psi_psi = jnp.sum(col[:, 0:Rp], axis=1, keepdims=True)       # ||F||^2
        num_re = jnp.sum(col[:, Rp:2 * Rp], axis=1, keepdims=True)   # Re<conj(T), F>
        num_im = jnp.sum(col[:, 2 * Rp:3 * Rp], axis=1, keepdims=True)
        inv = pl.reciprocal(psi_psi, approx=True)                    # EUP slot
        out_ref[...] = 1.0 - (num_re * num_re + num_im * num_im) * inv

    return kernel


def make_cp_loss_fn(dim_list, rank, target):
    """set_target equivalent: build constants + pallas_call once; return a jitted per-step loss."""
    dim_list = tuple(int(d) for d in dim_list)
    rank = int(rank)
    sel_np, tpack_np, Rp, n_rest = _build_static_slabs(dim_list, target)
    sel_bd = jnp.asarray(sel_np)        # static: depends only on dim_list
    t_pack = jnp.asarray(tpack_np)      # static: depends only on target
    kernel = _make_kernel(n_rest, Rp)
    vmem = pltpu.MemorySpace.VMEM
    call = pl.pallas_call(
        kernel,
        out_shape=jax.ShapeDtypeStruct((1, 1), jnp.float32),
        in_specs=[pl.BlockSpec(memory_space=vmem)] * 4,
        out_specs=pl.BlockSpec(memory_space=vmem),
    )

    @jax.jit
    def loss_fn(coeff, psi_list):
        f32 = jnp.float32
        # mode-0 operand with coeff folded in:  M = [[Sre^T, -Sim^T], [Sim^T, Sre^T]],
        # S = diag(coeff) @ psi_0  -> F = M @ [w_re ; w_im]
        p0 = psi_list[0]
        c = coeff.astype(f32)[:, None]
        sre = c * jnp.real(p0).astype(f32)
        sim = c * jnp.imag(p0).astype(f32)
        m0 = jnp.concatenate(
            [jnp.concatenate([sre.T, -sim.T], axis=1),
             jnp.concatenate([sim.T, sre.T], axis=1)], axis=0)   # (2*d0, 2*rank)
        # rest-mode factors packed as [re_1 | im_1 | re_2 | im_2 | ...]
        parts = []
        for p in psi_list[1:]:
            parts.append(jnp.real(p).astype(f32))
            parts.append(jnp.imag(p).astype(f32))
        lhs1 = jnp.concatenate(parts, axis=1)                    # (rank, 2*sum d_k, k>=1)
        out = call(lhs1, m0, sel_bd, t_pack)
        return out[0, 0]

    return loss_fn


# ---- parameter-manifold glue (plain JAX, deterministic init) ----
def sphere_complex(theta):
    # numqi.manifold.Sphere (quotient): unconstrained reals -> unit-norm complex rows
    psi = theta[..., 0] + 1j * theta[..., 1]
    return psi / jnp.linalg.norm(psi, axis=-1, keepdims=True)


if __name__ == "__main__":
    dim_list = (8, 8, 16)   # self.dim_list
    rank = 8                # CP rank

    key = jax.random.PRNGKey(0)
    keys = jax.random.split(key, len(dim_list) + 3)

    # Sphere-manifold factors psi_k : (rank, d_k) complex, unit rows
    psi_list = []
    for k, d in enumerate(dim_list):
        th = jax.random.normal(keys[k], (rank, d, 2), dtype=jnp.float32)
        psi_list.append(sphere_complex(th))

    # PositiveReal (softplus) coefficients
    coeff = jax.nn.softplus(
        jax.random.normal(keys[len(dim_list)], (rank,), dtype=jnp.float32))

    # set_target: random complex tensor, normalized to unit Frobenius norm
    t_re = jax.random.normal(keys[-2], dim_list, dtype=jnp.float32)
    t_im = jax.random.normal(keys[-1], dim_list, dtype=jnp.float32)
    tgt = t_re + 1j * t_im
    tgt = tgt / jnp.linalg.norm(tgt.reshape(-1))

    loss_fn = make_cp_loss_fn(dim_list, rank, tgt)   # one-time build (set_target)
    loss = loss_fn(coeff, psi_list)                  # per-step jitted call
    loss = jax.block_until_ready(loss)

    # ---- numpy (float64/complex128) reference of the forward pass ----
    coeff_np = np.asarray(coeff, dtype=np.float64)
    psi_np = [np.asarray(p, dtype=np.complex128) for p in psi_list]
    tgt_np = np.asarray(tgt, dtype=np.complex128)
    h = np.ones((rank, rank), dtype=np.complex128)
    for p in psi_np:
        h = h * (p @ p.conj().T)
    psi_psi = float(coeff_np @ np.real(h) @ coeff_np)
    cn_np = coeff_np / np.sqrt(psi_psi)
    v = np.einsum('ijk,ri,rj,rk->r', tgt_np.conj(), *psi_np)
    tp = np.sum(cn_np * v)
    ref_loss = 1.0 - (tp.real ** 2 + tp.imag ** 2)

    assert abs(float(loss) - float(ref_loss)) < 1e-3, (float(loss), float(ref_loss))
    print("KERNEL_OK")
</pallas_src>

<mosaic_0001>
module attributes {stable_mosaic.version = 11 : i64} {
  func.func @kernel(%arg0: memref<8x48xf32, #tpu.memory_space<vmem>>, %arg1: memref<16x16xf32, #tpu.memory_space<vmem>>, %arg2: memref<48x512xf32, #tpu.memory_space<vmem>>, %arg3: memref<16x256xf32, #tpu.memory_space<vmem>>, %arg4: memref<1x1xf32, #tpu.memory_space<vmem>>) attributes {dimension_semantics = [], scalar_prefetch = 0 : i64, scratch_operands = 0 : i64, tpu.core_type = #tpu.core_type<tc>} {
    %c0 = arith.constant 0 : index
    %c0_0 = arith.constant 0 : index
    %0 = vector.load %arg0[%c0, %c0_0] : memref<8x48xf32, #tpu.memory_space<vmem>>, vector<8x48xf32>
    %c0_1 = arith.constant 0 : index
    %c0_2 = arith.constant 0 : index
    %1 = vector.load %arg2[%c0_1, %c0_2] : memref<48x512xf32, #tpu.memory_space<vmem>>, vector<48x512xf32>
    %cst = arith.constant dense<0.000000e+00> : vector<8x512xf32>
    %2 = tpu.matmul %0, %1, %cst {dimension_numbers = #tpu.dot_dimension_numbers<[1], [0], [0], [1], [0, 0, 1, 1], [], []>} : vector<8x48xf32>, vector<48x512xf32>, vector<8x512xf32> -> vector<8x512xf32>
    %3 = vector.extract_strided_slice %2 {offsets = [0, 0], sizes = [8, 128], strides = [1, 1]} : vector<8x512xf32> to vector<8x128xf32>
    %4 = vector.extract_strided_slice %2 {offsets = [0, 128], sizes = [8, 128], strides = [1, 1]} : vector<8x512xf32> to vector<8x128xf32>
    %5 = vector.extract_strided_slice %2 {offsets = [0, 256], sizes = [8, 128], strides = [1, 1]} : vector<8x512xf32> to vector<8x128xf32>
    %6 = vector.extract_strided_slice %2 {offsets = [0, 384], sizes = [8, 128], strides = [1, 1]} : vector<8x512xf32> to vector<8x128xf32>
    %7 = arith.mulf %3, %5 : vector<8x128xf32>
    %8 = arith.mulf %4, %6 : vector<8x128xf32>
    %9 = arith.subf %7, %8 : vector<8x128xf32>
    %10 = arith.mulf %3, %6 : vector<8x128xf32>
    %11 = arith.mulf %4, %5 : vector<8x128xf32>
    %12 = arith.addf %10, %11 : vector<8x128xf32>
    %13 = tpu.concatenate %9, %12 in 0 : vector<8x128xf32>, vector<8x128xf32> -> vector<16x128xf32>
    %c0_3 = arith.constant 0 : index
    %c0_4 = arith.constant 0 : index
    %14 = vector.load %arg1[%c0_3, %c0_4] : memref<16x16xf32, #tpu.memory_space<vmem>>, vector<16x16xf32>
    %cst_5 = arith.constant dense<0.000000e+00> : vector<16x128xf32>
    %15 = tpu.matmul %14, %13, %cst_5 {dimension_numbers = #tpu.dot_dimension_numbers<[1], [0], [0], [1], [0, 0, 1, 1], [], []>} : vector<16x16xf32>, vector<16x128xf32>, vector<16x128xf32> -> vector<16x128xf32>
    %c0_6 = arith.constant 0 : index
    %c0_7 = arith.constant 0 : index
    %16 = vector.load %arg3[%c0_6, %c0_7] : memref<16x256xf32, #tpu.memory_space<vmem>>, vector<16x256xf32>
    %17 = arith.mulf %15, %15 : vector<16x128xf32>
    %18 = vector.extract_strided_slice %16 {offsets = [0, 0], sizes = [16, 128], strides = [1, 1]} : vector<16x256xf32> to vector<16x128xf32>
    %19 = arith.mulf %18, %15 : vector<16x128xf32>
    %20 = vector.extract_strided_slice %16 {offsets = [0, 128], sizes = [16, 128], strides = [1, 1]} : vector<16x256xf32> to vector<16x128xf32>
    %21 = arith.mulf %20, %15 : vector<16x128xf32>
    %22 = tpu.concatenate %17, %19, %21 in 1 : vector<16x128xf32>, vector<16x128xf32>, vector<16x128xf32> -> vector<16x384xf32>
    %cst_8 = arith.constant dense<0.000000e+00> : vector<384xf32>
    %23 = vector.multi_reduction <add>, %22, %cst_8 [0] : vector<16x384xf32> to vector<384xf32>
    %24 = vector.shape_cast %23 : vector<384xf32> to vector<1x384xf32>
    %25 = vector.extract_strided_slice %24 {offsets = [0, 0], sizes = [1, 128], strides = [1, 1]} : vector<1x384xf32> to vector<1x128xf32>
    %cst_9 = arith.constant dense<0.000000e+00> : vector<1xf32>
    %26 = vector.multi_reduction <add>, %25, %cst_9 [1] : vector<1x128xf32> to vector<1xf32>
    %27 = vector.shape_cast %26 : vector<1xf32> to vector<1x1xf32>
    %28 = vector.extract_strided_slice %24 {offsets = [0, 128], sizes = [1, 128], strides = [1, 1]} : vector<1x384xf32> to vector<1x128xf32>
    %cst_10 = arith.constant dense<0.000000e+00> : vector<1xf32>
    %29 = vector.multi_reduction <add>, %28, %cst_10 [1] : vector<1x128xf32> to vector<1xf32>
    %30 = vector.shape_cast %29 : vector<1xf32> to vector<1x1xf32>
    %31 = vector.extract_strided_slice %24 {offsets = [0, 256], sizes = [1, 128], strides = [1, 1]} : vector<1x384xf32> to vector<1x128xf32>
    %cst_11 = arith.constant dense<0.000000e+00> : vector<1xf32>
    %32 = vector.multi_reduction <add>, %31, %cst_11 [1] : vector<1x128xf32> to vector<1xf32>
    %33 = vector.shape_cast %32 : vector<1xf32> to vector<1x1xf32>
    %34 = tpu.reciprocal %27 {approx = true} : vector<1x1xf32> -> vector<1x1xf32>
    %35 = arith.mulf %30, %30 : vector<1x1xf32>
    %36 = arith.mulf %33, %33 : vector<1x1xf32>
    %37 = arith.addf %35, %36 : vector<1x1xf32>
    %38 = arith.mulf %37, %34 : vector<1x1xf32>
    %cst_12 = arith.constant 1.000000e+00 : f32
    %39 = vector.broadcast %cst_12 : f32 to vector<1x1xf32>
    %40 = arith.subf %39, %38 : vector<1x1xf32>
    %c0_13 = arith.constant 0 : index
    %c0_14 = arith.constant 0 : index
    %41 = vector.load %arg4[%c0_13, %c0_14] : memref<1x1xf32, #tpu.memory_space<vmem>>, vector<1x1xf32>
    tpu.vector_store %arg4[%c0_13, %c0_14], %40 {strides = array<i32>} : memref<1x1xf32, #tpu.memory_space<vmem>>, vector<1x1xf32>,
    return
  }
}

</mosaic_0001>

<llo_original>
// kernel: custom-call.2
$region0: #{custom-call.2}
  %s0 = inlined_call_operand.hbm [shape: c64[8,16], index: 0, kind: input, shape index: {}]
  %s1 = inlined_call_operand.vmem [shape: f32[8,16], index: 1, kind: output, shape index: {}]
  $region1: #{custom-call.2} parent=0
    #allocation0 [shape = 's32[1]{0}', space=sflag, size = 0x4, scoped, tag = 'scoped memory for custom-call.2']
    %2 = vsyncpa [#allocation0], 0
    %s4 = sshll.u32 %s0, 4
    %s5 = int_to_ptr.hbm [resolvable:$true] %s4
    %s6 = sshll.u32 %s1, 4
    %s7 = int_to_ptr.vmem [resolvable:$true] %s6
    %9 = dma.hbm_to_vmem [thread:$0]  %s5, 128, %s7, [#allocation0]
    %11 = dma.done [#allocation0], 128
    %12 = vsyncpa [#allocation0], 1

// kernel: custom-call
$region0: #{custom-call}
  %s0 = inlined_call_operand.hbm [shape: c64[8,8], index: 0, kind: input, shape index: {}]
  %s1 = inlined_call_operand.vmem [shape: f32[8,8], index: 1, kind: output, shape index: {}]
  $region1: #{custom-call} parent=0
    #allocation0 [shape = 's32[1]{0}', space=sflag, size = 0x4, scoped, tag = 'scoped memory for custom-call']
    %2 = vsyncpa [#allocation0], 0
    %s4 = sshll.u32 %s0, 4
    %s5 = int_to_ptr.hbm [resolvable:$true] %s4
    %s6 = sshll.u32 %s1, 4
    %s7 = int_to_ptr.vmem [resolvable:$true] %s6
    %9 = dma.hbm_to_vmem [thread:$0]  %s5, 128, %s7, [#allocation0]
    %11 = dma.done [#allocation0], 128
    %12 = vsyncpa [#allocation0], 1

// kernel: custom-call.3
$region0: #{custom-call.3}
  %s0 = inlined_call_operand.hbm [shape: c64[8,16], index: 0, kind: input, shape index: {}]
  %s1 = inlined_call_operand.vmem [shape: f32[8,16], index: 1, kind: output, shape index: {}]
  %s2 = scalar_lea.hbm %s0, 8
  $region1: #{custom-call.3} parent=0
    #allocation0 [shape = 's32[1]{0}', space=sflag, size = 0x4, scoped, tag = 'scoped memory for custom-call.3']
    %3 = vsyncpa [#allocation0], 0
    %s5 = sshll.u32 %s2, 4
    %s6 = int_to_ptr.hbm [resolvable:$true] %s5
    %s7 = sshll.u32 %s1, 4
    %s8 = int_to_ptr.vmem [resolvable:$true] %s7
    %10 = dma.hbm_to_vmem [thread:$0]  %s6, 128, %s8, [#allocation0]
    %12 = dma.done [#allocation0], 128
    %13 = vsyncpa [#allocation0], 1

// kernel: custom-call.1
$region0: #{custom-call.1}
  %s0 = inlined_call_operand.hbm [shape: c64[8,8], index: 0, kind: input, shape index: {}]
  %s1 = inlined_call_operand.vmem [shape: f32[8,8], index: 1, kind: output, shape index: {}]
  %s2 = scalar_lea.hbm %s0, 8
  $region1: #{custom-call.1} parent=0
    #allocation0 [shape = 's32[1]{0}', space=sflag, size = 0x4, scoped, tag = 'scoped memory for custom-call.1']
    %3 = vsyncpa [#allocation0], 0
    %s5 = sshll.u32 %s2, 4
    %s6 = int_to_ptr.hbm [resolvable:$true] %s5
    %s7 = sshll.u32 %s1, 4
    %s8 = int_to_ptr.vmem [resolvable:$true] %s7
    %10 = dma.hbm_to_vmem [thread:$0]  %s6, 128, %s8, [#allocation0]
    %12 = dma.done [#allocation0], 128
    %13 = vsyncpa [#allocation0], 1

// kernel: custom-call.5
$region0: #{custom-call.5}
  %s0 = inlined_call_operand.vmem [shape: c64[8,8], index: 0, kind: input, shape index: {}]
  %s1 = inlined_call_operand.vmem [shape: f32[8,8], index: 1, kind: output, shape index: {}]
  %s2 = scalar_lea.vmem %s0, 8
  %v3 = vld [vmem:[%s2] sm:$0xff]
  %4 = vst [vmem:[%s1] sm:$0xff] %v3

// kernel: custom-call.4
$region0: #{custom-call.4}
  %s0 = inlined_call_operand.vmem [shape: c64[8,8], index: 0, kind: input, shape index: {}]
  %s1 = inlined_call_operand.vmem [shape: f32[8,8], index: 1, kind: output, shape index: {}]
  %v2 = vld [vmem:[%s0] sm:$0xff]
  %3 = vst [vmem:[%s1] sm:$0xff] %v2

// kernel: loss_fn.1
$region0: #{loss_fn.1}
  #allocation0 [shape = 'u32[]', space=smem, size = 0x4, offset = 0x4, fixed_abs, tag = 'smem constant byte address 0x4 - core index']
  #allocation1 [shape = 'u32[72,128]{1,0:T(1,128)}', space=vmem, size = 0x9000, scoped, tag = 'internal scratch']
  %s0 = inlined_call_operand.vmem [shape: f32[8,48], index: 0, kind: input, shape index: {}]
  %s1 = inlined_call_operand.vmem [shape: f32[16,16], index: 1, kind: input, shape index: {}]
  %s2 = inlined_call_operand.hbm [shape: f32[48,512], index: 2, kind: input, shape index: {}]
  %s3 = inlined_call_operand.vmem [shape: f32[16,256], index: 3, kind: input, shape index: {}]
  %s4 = inlined_call_operand.hbm [shape: f32[1,1], index: 4, kind: output, shape index: {}]
  %s5 = sld [smem:[#allocation0]]
  $region30: #{loss_fn.1} parent=0
    _
  %s7 = ssub.s32 1, %s5
  %s8 = scalar_select 0, %s7, %s5
  $region1: #{loss_fn.1} parent=0
    #allocation2 [shape = 'u8[98304]{0}', space=vmem, size = 0x18000, scoped, tag = 'input window, operand 2, single buffered']
    #allocation3 [shape = 's32[1]{0}', space=sflag, size = 0x4, scoped, tag = 'scoped memory for loss_fn.1']
    #allocation4 [shape = 's32[1]{0}', space=sflag, size = 0x4, scoped, tag = 'scoped memory for loss_fn.1']
    #allocation5 [shape = 'u8[512]{0}', space=vmem, size = 0x400, scoped, tag = 'output window, operand 0, single buffered']
    %9 = vsyncpa [#allocation3], 0
    %10 = vsyncpa [#allocation4], 0
    // Predicated region
    $region2: #{loss_fn.1} parent=1 // pred_check
      _
    $region3: #{loss_fn.1} parent=1 // pred_check_branch
      %12 = sbr.rel (0) target = $region5
    $region4: #{loss_fn.1} parent=1 // pred_region
      _
    $region5: #{loss_fn.1} parent=1 // pred_fallthru
      _
    // Predicated region
    $region6: #{loss_fn.1} parent=1 // pred_check
      _
    $region7: #{loss_fn.1} parent=1 // pred_check_branch
      %14 = sbr.rel (0) target = $region9
    $region8: #{loss_fn.1} parent=1 // pred_region
      _
    $region9: #{loss_fn.1} parent=1 // pred_fallthru
      _
    // Predicated region
    $region10: #{loss_fn.1} parent=1 // pred_check
      _
    $region11: #{loss_fn.1} parent=1 // pred_check_branch
      %16 = sbr.rel (0) target = $region13
    $region12: #{loss_fn.1} parent=1 // pred_region
      %18 = vsyncadd [#allocation3], 0
      %s19 = sshll.u32 %s2, 4
      %s20 = int_to_ptr.hbm [resolvable:$true] %s19
      %s21 = sshll.u32 [#allocation2], 4
      %s22 = int_to_ptr.vmem [resolvable:$true] %s21
      %27 = dma.hbm_to_vmem [thread:$0]  %s20, 3072, %s22, [#allocation3], 512, 512, 32
    $region13: #{loss_fn.1} parent=1 // pred_fallthru
      _
    // Predicated region
    $region14: #{loss_fn.1} parent=1 // pred_check
      _
    $region15: #{loss_fn.1} parent=1 // pred_check_branch
      %29 = sbr.rel (0) target = $region17
    $region16: #{loss_fn.1} parent=1 // pred_region
      _
    $region17: #{loss_fn.1} parent=1 // pred_fallthru
      _
    // Predicated region
    $region18: #{loss_fn.1} parent=1 // pred_check
      _
    $region19: #{loss_fn.1} parent=1 // pred_check_branch
      %31 = sbr.rel (0) target = $region21
    $region20: #{loss_fn.1} parent=1 // pred_region
      %33 = dma.done [#allocation3], 3072
    $region21: #{loss_fn.1} parent=1 // pred_fallthru
      _
    %v34 = vld [vmem:[%s0] sm:$0xff]
    %v35 = vld [vmem:[#allocation2] sm:$0xff]
    %v36 = vld [vmem:[#allocation2 + $0x8] sm:$0xff]
    %v37 = vld [vmem:[#allocation2 + $0x10] sm:$0xff]
    %v38 = vld [vmem:[#allocation2 + $0x18] sm:$0xff]
    %v39 = vld [vmem:[#allocation2 + $0x20] sm:$0xff]
    %v40 = vld [vmem:[#allocation2 + $0x28] sm:$0xff]
    %v41 = vld [vmem:[#allocation2 + $0x30] sm:$0xff]
    %v42 = vld [vmem:[#allocation2 + $0x38] sm:$0xff]
    %v43 = vld [vmem:[#allocation2 + $0x40] sm:$0xff]
    %v44 = vld [vmem:[#allocation2 + $0x48] sm:$0xff]
    %v45 = vld [vmem:[#allocation2 + $0x50] sm:$0xff]
    %v46 = vld [vmem:[#allocation2 + $0x58] sm:$0xff]
    %v47 = vld [vmem:[#allocation2 + $0x60] sm:$0xff]
    %v48 = vld [vmem:[#allocation2 + $0x68] sm:$0xff]
    %v49 = vld [vmem:[#allocation2 + $0x70] sm:$0xff]
    %v50 = vld [vmem:[#allocation2 + $0x78] sm:$0xff]
    %v51 = vld [vmem:[#allocation2 + $0x80] sm:$0xff]
    %v52 = vld [vmem:[#allocation2 + $0x88] sm:$0xff]
    %v53 = vld [vmem:[#allocation2 + $0x90] sm:$0xff]
    %v54 = vld [vmem:[#allocation2 + $0x98] sm:$0xff]
    %v55 = vld [vmem:[#allocation2 + $0xa0] sm:$0xff]
    %v56 = vld [vmem:[#allocation2 + $0xa8] sm:$0xff]
    %v57 = vld [vmem:[#allocation2 + $0xb0] sm:$0xff]
    %v58 = vld [vmem:[#allocation2 + $0xb8] sm:$0xff]
    %vm59 = vcmask 392192
    %v61 = vsel %vm59, %v34, 0
    %63 = vmatpush.msra.mxu0 0.0
    %64 = vmatpush.msra.mxu0 0.0
    %65 = vmatpush.msra.mxu0 0.0
    %66 = vmatpush.msra.mxu0 0.0
    %67 = vmatpush.msra.mxu0 0.0
    %68 = vmatpush.msra.mxu0 0.0
    %69 = vmatpush.msra.mxu0 0.0
    %70 = vmatpush.msra.mxu0 0.0
    %71 = vmatpush.msra.mxu0 0.0
    %72 = vmatpush.msra.mxu0 0.0
    %73 = vmatpush.msra.mxu0 %v55
    %74 = vmatpush.msra.mxu0 %v51
    %75 = vmatpush.msra.mxu0 %v47
    %76 = vmatpush.msra.mxu0 %v43
    %77 = vmatpush.msra.mxu0 %v39
    %78 = vmatpush.msra.mxu0 %v35
    %79 = vmatmul.f32.gmra.mxu0 %v61
    %v80 = vpop.f32.mrf.mxu0
    %v81 = vadd.f32 0.0, %v80
    %82 = vdwg.mxu0
    %83 = vmatpush.msra.mxu0 0.0
    %84 = vmatpush.msra.mxu0 0.0
    %85 = vmatpush.msra.mxu0 0.0
    %86 = vmatpush.msra.mxu0 0.0
    %87 = vmatpush.msra.mxu0 0.0
    %88 = vmatpush.msra.mxu0 0.0
    %89 = vmatpush.msra.mxu0 0.0
    %90 = vmatpush.msra.mxu0 0.0
    %91 = vmatpush.msra.mxu0 0.0
    %92 = vmatpush.msra.mxu0 0.0
    %93 = vmatpush.msra.mxu0 %v56
    %94 = vmatpush.msra.mxu0 %v52
    %95 = vmatpush.msra.mxu0 %v48
    %96 = vmatpush.msra.mxu0 %v44
    %97 = vmatpush.msra.mxu0 %v40
    %98 = vmatpush.msra.mxu0 %v36
    %99 = vmatmul.f32.gmra.mxu0 %v61
    %v100 = vpop.f32.mrf.mxu0
    %v101 = vadd.f32 0.0, %v100
    %102 = vdwg.mxu0
    %103 = vmatpush.msra.mxu0 0.0
    %104 = vmatpush.msra.mxu0 0.0
    %105 = vmatpush.msra.mxu0 0.0
    %106 = vmatpush.msra.mxu0 0.0
    %107 = vmatpush.msra.mxu0 0.0
    %108 = vmatpush.msra.mxu0 0.0
    %109 = vmatpush.msra.mxu0 0.0
    %110 = vmatpush.msra.mxu0 0.0
    %111 = vmatpush.msra.mxu0 0.0
    %112 = vmatpush.msra.mxu0 0.0
    %113 = vmatpush.msra.mxu0 %v57
    %114 = vmatpush.msra.mxu0 %v53
    %115 = vmatpush.msra.mxu0 %v49
    %116 = vmatpush.msra.mxu0 %v45
    %117 = vmatpush.msra.mxu0 %v41
    %118 = vmatpush.msra.mxu0 %v37
    %119 = vmatmul.f32.gmra.mxu0 %v61
    %v120 = vpop.f32.mrf.mxu0
    %v121 = vadd.f32 0.0, %v120
    %122 = vdwg.mxu0
    %123 = vmatpush.msra.mxu0 0.0
    %124 = vmatpush.msra.mxu0 0.0
    %125 = vmatpush.msra.mxu0 0.0
    %126 = vmatpush.msra.mxu0 0.0
    %127 = vmatpush.msra.mxu0 0.0
    %128 = vmatpush.msra.mxu0 0.0
    %129 = vmatpush.msra.mxu0 0.0
    %130 = vmatpush.msra.mxu0 0.0
    %131 = vmatpush.msra.mxu0 0.0
    %132 = vmatpush.msra.mxu0 0.0
    %133 = vmatpush.msra.mxu0 %v58
    %134 = vmatpush.msra.mxu0 %v54
    %135 = vmatpush.msra.mxu0 %v50
    %136 = vmatpush.msra.mxu0 %v46
    %137 = vmatpush.msra.mxu0 %v42
    %138 = vmatpush.msra.mxu0 %v38
    %139 = vmatmul.f32.gmra.mxu0 %v61
    %v140 = vpop.f32.mrf.mxu0
    %v141 = vadd.f32 0.0, %v140
    %142 = vdwg.mxu0
    %v143 = vmul.f32 %v81, %v121
    %v144 = vmul.f32 %v101, %v141
    %v145 = vsub.f32 %v143, %v144
    %v146 = vmul.f32 %v81, %v141
    %v147 = vmul.f32 %v101, %v121
    %v148 = vadd.f32 %v146, %v147
    %v149 = vld [vmem:[%s1] sm:$0xff]
    %v150 = vld [vmem:[%s1 + $0x8] sm:$0xff]
    %vm151 = vcmask 130048
    %v153 = vsel %vm151, %v149, 0
    %v156 = vsel %vm151, %v150, 0
    %158 = vmatpush.msra.mxu0 0.0
    %159 = vmatpush.msra.mxu0 0.0
    %160 = vmatpush.msra.mxu0 0.0
    %161 = vmatpush.msra.mxu0 0.0
    %162 = vmatpush.msra.mxu0 0.0
    %163 = vmatpush.msra.mxu0 0.0
    %164 = vmatpush.msra.mxu0 0.0
    %165 = vmatpush.msra.mxu0 0.0
    %166 = vmatpush.msra.mxu0 0.0
    %167 = vmatpush.msra.mxu0 0.0
    %168 = vmatpush.msra.mxu0 0.0
    %169 = vmatpush.msra.mxu0 0.0
    %170 = vmatpush.msra.mxu0 0.0
    %171 = vmatpush.msra.mxu0 0.0
    %172 = vmatpush.msra.mxu0 %v148
    %173 = vmatpush.msra.mxu0 %v145
    %174 = vmatmul.f32.gmra.mxu0 %v153
    %v175 = vpop.f32.mrf.mxu0
    %v176 = vadd.f32 0.0, %v175
    %177 = vmatmul.f32.gmra.mxu0 %v156
    %v178 = vpop.f32.mrf.mxu0
    %v179 = vadd.f32 0.0, %v178
    %180 = vdwg.mxu0
    %v181 = vld [vmem:[%s3] sm:$0xff]
    %v182 = vld [vmem:[%s3 + $0x8] sm:$0xff]
    %v183 = vld [vmem:[%s3 + $0x10] sm:$0xff]
    %v184 = vld [vmem:[%s3 + $0x18] sm:$0xff]
    %v185 = vmul.f32 %v176, %v176
    %v186 = vmul.f32 %v179, %v179
    %v187 = vmul.f32 %v181, %v176
    %v188 = vmul.f32 %v183, %v179
    %v189 = vmul.f32 %v182, %v176
    %v190 = vmul.f32 %v184, %v179
    %v191 = vadd.f32 %v185, %v186
    %v192 = vrot.slane %v191, 4
    %v193 = vadd.f32 %v191, %v192
    %v194 = vrot.slane %v193, 2
    %v195 = vadd.f32 %v193, %v194
    %v196 = vrot.slane %v195, 1
    %v197 = vadd.f32 %v195, %v196
    %v198 = vadd.f32 %v187, %v188
    %v199 = vrot.slane %v198, 4
    %v200 = vadd.f32 %v198, %v199
    %v201 = vrot.slane %v200, 2
    %v202 = vadd.f32 %v200, %v201
    %v203 = vrot.slane %v202, 1
    %v204 = vadd.f32 %v202, %v203
    %v205 = vadd.f32 %v189, %v190
    %v206 = vrot.slane %v205, 4
    %v207 = vadd.f32 %v205, %v206
    %v208 = vrot.slane %v207, 2
    %v209 = vadd.f32 %v207, %v208
    %v210 = vrot.slane %v209, 1
    %v211 = vadd.f32 %v209, %v210
    %212 = vadd.xlane.f32.xlu0 %v197
    %v213 = vpop.xlane.xlu0 %212
    %214 = vadd.xlane.f32.xlu0 %v204
    %v215 = vpop.xlane.xlu0 %214
    %216 = vadd.xlane.f32.xlu0 %v211
    %v217 = vpop.xlane.xlu0 %216
    %v218 = vrcp.pop %v213
    %v219 = vmul.f32 %v215, %v215
    %v220 = vmul.f32 %v217, %v217
    %v221 = vadd.f32 %v219, %v220
    %v222 = vmul.f32 %v221, %v218
    %v223 = vsub.f32 1.0, %v222
    %vm224 = vcmask 0
    %225 = vst.msk [vmem:[#allocation5] sm:$0x1] %vm224, %v223
    // Predicated region
    $region22: #{loss_fn.1} parent=1 // pred_check
      _
    $region23: #{loss_fn.1} parent=1 // pred_check_branch
      %227 = sbr.rel (0) target = $region25
    $region24: #{loss_fn.1} parent=1 // pred_region
      %229 = vsyncadd [#allocation4], 0
      %s231 = sshll.u32 [#allocation5], 4
      %s232 = int_to_ptr.vmem [resolvable:$true] %s231
      %s233 = sshll.u32 %s4, 4
      %s234 = int_to_ptr.hbm [resolvable:$true] %s233
      %236 = dma.vmem_to_hbm [thread:$0]  %s232, 16, %s234, [#allocation4]
    $region25: #{loss_fn.1} parent=1 // pred_fallthru
      _
    // Predicated region
    $region26: #{loss_fn.1} parent=1 // pred_check
      _
    $region27: #{loss_fn.1} parent=1 // pred_check_branch
      %238 = sbr.rel (0) target = $region29
    $region28: #{loss_fn.1} parent=1 // pred_region
      %240 = dma.done [#allocation4], 16
    $region29: #{loss_fn.1} parent=1 // pred_fallthru
      _
    %241 = vsyncpa [#allocation3], 1
    %242 = vsyncpa [#allocation4], 1

</llo_original>
